<compile_context>
chip_gen: v5e
topology: v5e:2x2
jax: 0.10.0
libtpu: 0.0.40
codegen_flags: <defaults>
</compile_context>

<pallas_src>
import functools

import jax
import jax.numpy as jnp
import numpy as np
from jax.experimental import pallas as pl
from jax.experimental.pallas import tpu as pltpu

_LANE = 128
_TILE_BYTES = 4 * 1024 * 1024          # per-buffer VMEM tile target
_VMEM_LIMIT_BYTES = 32 * 1024 * 1024   # raised scoped limit (safe v5e/v6e/v7x)


def _mean_std_kernel(val_ref, mean_ref, inv_std_ref, out_ref, *, clip):
    # Pure elementwise hot path: (val - mean) * inv_std, optional symmetric clamp.
    x = (val_ref[...] - mean_ref[...]) * inv_std_ref[...]
    if clip is not None:
        x = jnp.clip(x, -clip, clip)
    out_ref[...] = x.astype(out_ref.dtype)


def mean_std_forward(val, mean, std, clip=None, *, donate_input=False):
    """Pallas implementation of MeanStd.forward.

    val:  (..., F) array (computed in f32, output cast back to val.dtype)
    mean: (F,) float32
    std:  (F,) float32 (positive; MeanStd enforces std >= eps)
    clip: optional python float
    donate_input: alias the output onto the input HBM buffer (only safe when
        the caller does not reuse `val` afterwards).
    """
    orig_shape = val.shape
    F = int(orig_shape[-1])
    B = int(np.prod(orig_shape[:-1])) if len(orig_shape) > 1 else 1
    out_dtype = val.dtype
    itemsize = jnp.dtype(out_dtype).itemsize

    mean_f32 = mean.astype(jnp.float32)
    inv_std = 1.0 / std.astype(jnp.float32)       # hoisted out of the kernel

    val2 = val.reshape(B, F)                      # contiguous reshape: free

    # ---- lane layout: never pad/slice the data tensor ----------------------
    if F % _LANE != 0 and _LANE % F == 0 and (B * F) % _LANE == 0:
        # Small F that divides 128 (e.g. 32): fold rows into lane-dense cols.
        rep = _LANE // F
        R, C = (B * F) // _LANE, _LANE
        val2d = val2.reshape(R, C)                # contiguous reshape: free
        mean_row = jnp.tile(mean_f32, rep)
        inv_row = jnp.tile(inv_std, rep)
    else:
        # Either F is already a multiple of 128 (fully lane-dense), or F is
        # ragged: keep the last block dim equal to the full F (legal per the
        # (8,128) rule).  Stores are lane-masked but HBM traffic is minimal.
        R, C = B, F
        val2d = val2
        mean_row, inv_row = mean_f32, inv_std

    mean2d = mean_row.reshape(1, C)
    inv2d = inv_row.reshape(1, C)

    # ---- dtype-aware row tiling --------------------------------------------
    sublane = max(8, 32 // itemsize)              # 8 f32 / 16 bf16 / 32 int8
    row_vmem_bytes = pl.cdiv(C, _LANE) * _LANE * itemsize
    tile_rows = max(sublane,
                    (_TILE_BYTES // row_vmem_bytes) // sublane * sublane)

    if tile_rows >= R:
        if R >= 2 * sublane:
            # Split into >=2 blocks so the "parallel" axis can shard across
            # v7x's two TensorCores even when one tile would hold everything.
            tb = pl.cdiv(pl.cdiv(R, 2), sublane) * sublane
        else:
            tb = R                                # single block == full dim
    else:
        tb = tile_rows
    grid = (pl.cdiv(R, tb),)                      # ragged last block is masked

    kernel = functools.partial(_mean_std_kernel, clip=clip)

    cost = pl.CostEstimate(
        flops=3 * R * C,
        transcendentals=0,
        bytes_accessed=2 * R * C * itemsize + 2 * C * 4,
    )

    out2d = pl.pallas_call(
        kernel,
        out_shape=jax.ShapeDtypeStruct((R, C), out_dtype),
        grid_spec=pl.GridSpec(
            grid=grid,
            in_specs=[
                pl.BlockSpec((tb, C), lambda i: (i, 0)),   # val tile
                pl.BlockSpec((1, C), lambda i: (0, 0)),    # mean (resident)
                pl.BlockSpec((1, C), lambda i: (0, 0)),    # inv_std (resident)
            ],
            out_specs=pl.BlockSpec((tb, C), lambda i: (i, 0)),
        ),
        compiler_params=pltpu.CompilerParams(
            dimension_semantics=("parallel",),    # independent rows; v7x TCs
            vmem_limit_bytes=_VMEM_LIMIT_BYTES,
        ),
        cost_estimate=cost,
        input_output_aliases={0: 0} if donate_input else {},
    )(val2d, mean2d, inv2d)

    return out2d.reshape(orig_shape)


def _ref_forward(val, mean, std, clip):
    ref = (np.asarray(val) - np.asarray(mean)[None, :]) / np.asarray(std)[None, :]
    if clip is not None:
        ref = np.clip(ref, -clip, clip)
    return ref


if __name__ == "__main__":
    key = jax.random.PRNGKey(0)

    cases = [
        dict(B=8, F=32, clip=5.0),     # lane-fold path (F divides 128)
        dict(B=16, F=48, clip=5.0),    # ragged-F path (no pad/slice, grid=(2,))
        dict(B=4, F=128, clip=None),   # already lane-dense, no clip
    ]

    for case in cases:
        B, F, clip = case["B"], case["F"], case["clip"]
        key, k_val, k_mean, k_std = jax.random.split(key, 4)
        val = jax.random.normal(k_val, (B, F), dtype=jnp.float32) * 3.0 + 1.0
        mean = jax.random.normal(k_mean, (F,), dtype=jnp.float32)
        std = jnp.maximum(
            jnp.abs(jax.random.normal(k_std, (F,), dtype=jnp.float32)) + 0.1,
            0.01)

        out = jax.block_until_ready(mean_std_forward(val, mean, std, clip=clip))
        np.testing.assert_allclose(
            np.asarray(out), _ref_forward(val, mean, std, clip),
            rtol=1e-5, atol=1e-5)

    print("KERNEL_OK")
</pallas_src>

<mosaic_0001>
module attributes {stable_mosaic.version = 11 : i64} {
  func.func @_mean_std_kernel(%arg0: i32, %arg1: memref<2x128xf32, #tpu.memory_space<vmem>>, %arg2: memref<1x128xf32, #tpu.memory_space<vmem>>, %arg3: memref<1x128xf32, #tpu.memory_space<vmem>>, %arg4: memref<2x128xf32, #tpu.memory_space<vmem>>) attributes {dimension_semantics = [#tpu.dimension_semantics<parallel>], iteration_bounds = array<i64: 1>, scalar_prefetch = 0 : i64, scratch_operands = 0 : i64, tpu.core_type = #tpu.core_type<tc>, window_params = [{transform_indices = @transform_0, window_bounds = array<i64: 2, 128>}, {pipeline_mode = #tpu.pipeline_mode<synchronous>, transform_indices = @transform_1, window_bounds = array<i64: 1, 128>}, {pipeline_mode = #tpu.pipeline_mode<synchronous>, transform_indices = @transform_2, window_bounds = array<i64: 1, 128>}, {transform_indices = @transform_3, window_bounds = array<i64: 2, 128>}]} {
    %c0 = arith.constant 0 : index
    %c0_0 = arith.constant 0 : index
    %0 = vector.load %arg1[%c0, %c0_0] : memref<2x128xf32, #tpu.memory_space<vmem>>, vector<2x128xf32>
    %c0_1 = arith.constant 0 : index
    %c0_2 = arith.constant 0 : index
    %1 = vector.load %arg2[%c0_1, %c0_2] : memref<1x128xf32, #tpu.memory_space<vmem>>, vector<1x128xf32>
    %2 = vector.broadcast %1 : vector<1x128xf32> to vector<2x128xf32>
    %3 = arith.subf %0, %2 : vector<2x128xf32>
    %c0_3 = arith.constant 0 : index
    %c0_4 = arith.constant 0 : index
    %4 = vector.load %arg3[%c0_3, %c0_4] : memref<1x128xf32, #tpu.memory_space<vmem>>, vector<1x128xf32>
    %5 = vector.broadcast %4 : vector<1x128xf32> to vector<2x128xf32>
    %6 = arith.mulf %3, %5 : vector<2x128xf32>
    %cst = arith.constant -5.000000e+00 : f32
    %cst_5 = arith.constant 5.000000e+00 : f32
    %7 = vector.broadcast %cst : f32 to vector<2x128xf32>
    %8 = arith.maximumf %7, %6 : vector<2x128xf32>
    %9 = vector.broadcast %cst_5 : f32 to vector<2x128xf32>
    %10 = arith.minimumf %9, %8 : vector<2x128xf32>
    %c0_6 = arith.constant 0 : index
    %c0_7 = arith.constant 0 : index
    %11 = vector.load %arg4[%c0_6, %c0_7] : memref<2x128xf32, #tpu.memory_space<vmem>>, vector<2x128xf32>
    tpu.vector_store %arg4[%c0_6, %c0_7], %10 {strides = array<i32>} : memref<2x128xf32, #tpu.memory_space<vmem>>, vector<2x128xf32>,
    return
  }
  func.func @transform_0(%arg0: i32) -> (i32, i32) {
    %c0_i32 = arith.constant 0 : i32
    %c0_i32_0 = arith.constant 0 : i32
    return %arg0, %c0_i32 : i32, i32
  }
  func.func @transform_1(%arg0: i32) -> (i32, i32) {
    %c0_i32 = arith.constant 0 : i32
    %c0_i32_0 = arith.constant 0 : i32
    %c0_i32_1 = arith.constant 0 : i32
    return %c0_i32, %c0_i32_0 : i32, i32
  }
  func.func @transform_2(%arg0: i32) -> (i32, i32) {
    %c0_i32 = arith.constant 0 : i32
    %c0_i32_0 = arith.constant 0 : i32
    %c0_i32_1 = arith.constant 0 : i32
    return %c0_i32, %c0_i32_0 : i32, i32
  }
  func.func @transform_3(%arg0: i32) -> (i32, i32) {
    %c0_i32 = arith.constant 0 : i32
    %c0_i32_0 = arith.constant 0 : i32
    return %arg0, %c0_i32 : i32, i32
  }
}

</mosaic_0001>

<llo_original>
// kernel: tpu_custom_call.1
$region0: #{tpu_custom_call.1}
  #allocation0 [shape = 'u32[]', space=smem, size = 0x4, offset = 0x4, fixed_abs, tag = 'smem constant byte address 0x4 - core index']
  #allocation1 [shape = 'u32[72,128]{1,0:T(1,128)}', space=vmem, size = 0x9000, scoped, tag = 'internal scratch']
  %s0 = inlined_call_operand.hbm [shape: f32[2,128], index: 0, kind: input, shape index: {}]
  %s1 = inlined_call_operand.hbm [shape: f32[1,128], index: 1, kind: input, shape index: {}]
  %s2 = inlined_call_operand.vmem [shape: f32[1,128], index: 2, kind: input, shape index: {}]
  %s3 = inlined_call_operand.hbm [shape: f32[2,128], index: 3, kind: output, shape index: {}]
  %s4 = sld [smem:[#allocation0]]
  $region30: #{tpu_custom_call.1} parent=0
    _
  %s6 = ssub.s32 1, %s4
  %s7 = scalar_select 0, %s6, %s4
  $region1: #{tpu_custom_call.1} parent=0
    #allocation2 [shape = 'u8[1024]{0}', space=vmem, size = 0x400, scoped, tag = 'input window, operand 0, single buffered']
    #allocation3 [shape = 's32[1]{0}', space=sflag, size = 0x4, scoped, tag = 'scoped memory for tpu_custom_call.1']
    #allocation4 [shape = 's32[1]{0}', space=sflag, size = 0x4, scoped, tag = 'scoped memory for tpu_custom_call.1']
    #allocation5 [shape = 'u8[512]{0}', space=vmem, size = 0x400, scoped, tag = 'input window, operand 1, single buffered']
    #allocation6 [shape = 's32[1]{0}', space=sflag, size = 0x4, scoped, tag = 'scoped memory for tpu_custom_call.1']
    #allocation7 [shape = 'u8[1024]{0}', space=vmem, size = 0x400, scoped, tag = 'output window, operand 0, single buffered']
    %8 = vsyncpa [#allocation3], 0
    %9 = vsyncpa [#allocation6], 0
    %10 = vsyncpa [#allocation4], 0
    // Predicated region
    $region2: #{tpu_custom_call.1} parent=1 // pred_check
      _
    $region3: #{tpu_custom_call.1} parent=1 // pred_check_branch
      %12 = sbr.rel (0) target = $region5
    $region4: #{tpu_custom_call.1} parent=1 // pred_region
      %14 = vsyncadd [#allocation3], 0
      %s16 = sshll.u32 %s0, 4
      %s17 = int_to_ptr.hbm [resolvable:$true] %s16
      %s18 = sshll.u32 [#allocation2], 4
      %s19 = int_to_ptr.vmem [resolvable:$true] %s18
      %21 = dma.hbm_to_vmem [thread:$0]  %s17, 32, %s19, [#allocation3]
    $region5: #{tpu_custom_call.1} parent=1 // pred_fallthru
      _
    // Predicated region
    $region6: #{tpu_custom_call.1} parent=1 // pred_check
      _
    $region7: #{tpu_custom_call.1} parent=1 // pred_check_branch
      %23 = sbr.rel (0) target = $region9
    $region8: #{tpu_custom_call.1} parent=1 // pred_region
      %25 = vsyncadd [#allocation6], 0
      %s27 = sshll.u32 %s1, 4
      %s28 = int_to_ptr.hbm [resolvable:$true] %s27
      %s29 = sshll.u32 [#allocation5], 4
      %s30 = int_to_ptr.vmem [resolvable:$true] %s29
      %32 = dma.hbm_to_vmem [thread:$0]  %s28, 16, %s30, [#allocation6]
    $region9: #{tpu_custom_call.1} parent=1 // pred_fallthru
      _
    // Predicated region
    $region10: #{tpu_custom_call.1} parent=1 // pred_check
      _
    $region11: #{tpu_custom_call.1} parent=1 // pred_check_branch
      %34 = sbr.rel (0) target = $region13
    $region12: #{tpu_custom_call.1} parent=1 // pred_region
      _
    $region13: #{tpu_custom_call.1} parent=1 // pred_fallthru
      _
    // Predicated region
    $region14: #{tpu_custom_call.1} parent=1 // pred_check
      _
    $region15: #{tpu_custom_call.1} parent=1 // pred_check_branch
      %36 = sbr.rel (0) target = $region17
    $region16: #{tpu_custom_call.1} parent=1 // pred_region
      %38 = dma.done [#allocation3], 32
    $region17: #{tpu_custom_call.1} parent=1 // pred_fallthru
      _
    // Predicated region
    $region18: #{tpu_custom_call.1} parent=1 // pred_check
      _
    $region19: #{tpu_custom_call.1} parent=1 // pred_check_branch
      %40 = sbr.rel (0) target = $region21
    $region20: #{tpu_custom_call.1} parent=1 // pred_region
      %42 = dma.done [#allocation6], 16
    $region21: #{tpu_custom_call.1} parent=1 // pred_fallthru
      _
    %v43 = vld [vmem:[#allocation2] sm:$0x3]
    %v44 = vld [vmem:[#allocation5] sm:$0x1]
    %v46 = vperm.slane %v44, 0
    %v48 = vsub.f32 %v43, %v46
    %v49 = vld [vmem:[%s2] sm:$0x1]
    %v51 = vperm.slane %v49, 0
    %v53 = vmul.f32 %v48, %v51
    %v54 = vmax.f32 %v53, -5.0
    %v55 = vmin.f32 %v54, 5.0
    %56 = vst [vmem:[#allocation7] sm:$0x3] %v55
    // Predicated region
    $region22: #{tpu_custom_call.1} parent=1 // pred_check
      _
    $region23: #{tpu_custom_call.1} parent=1 // pred_check_branch
      %58 = sbr.rel (0) target = $region25
    $region24: #{tpu_custom_call.1} parent=1 // pred_region
      %60 = vsyncadd [#allocation4], 0
      %s62 = sshll.u32 [#allocation7], 4
      %s63 = int_to_ptr.vmem [resolvable:$true] %s62
      %s64 = sshll.u32 %s3, 4
      %s65 = int_to_ptr.hbm [resolvable:$true] %s64
      %67 = dma.vmem_to_hbm [thread:$0]  %s63, 32, %s65, [#allocation4]
    $region25: #{tpu_custom_call.1} parent=1 // pred_fallthru
      _
    // Predicated region
    $region26: #{tpu_custom_call.1} parent=1 // pred_check
      _
    $region27: #{tpu_custom_call.1} parent=1 // pred_check_branch
      %69 = sbr.rel (0) target = $region29
    $region28: #{tpu_custom_call.1} parent=1 // pred_region
      %71 = dma.done [#allocation4], 32
    $region29: #{tpu_custom_call.1} parent=1 // pred_fallthru
      _
    %72 = vsyncpa [#allocation3], 1
    %73 = vsyncpa [#allocation6], 1
    %74 = vsyncpa [#allocation4], 1

</llo_original>
